<compile_context>
chip_gen: v7x
topology: tpu7x:2x2x1
jax: 0.10.0
libtpu: 0.0.40
codegen_flags: <defaults>
</compile_context>

<pallas_src>
import jax
import jax.numpy as jnp
from jax.experimental import pallas as pl
from jax.experimental.pallas import tpu as pltpu


# --------------------------------------------------------------------------- #
# Kernels
# --------------------------------------------------------------------------- #
def _forward_kernel(xa_ref, w1_ref, b1_ref, w2_ref, b2_ref, w3_ref, b3_ref,
                    o_ref):
    # Layer 1: cat((x, actions)) already fused in the wrapper -> single matmul.
    h = jnp.tanh(
        jnp.dot(w1_ref[...], xa_ref[...], preferred_element_type=jnp.float32)
        + b1_ref[...])                                            # [H, bb]
    h = jnp.tanh(
        jnp.dot(w2_ref[...], h, preferred_element_type=jnp.float32)
        + b2_ref[...])                                            # [H, bb]
    # fc_output: [1,H]x[H,bb] matmul replaced by VPU mul + sublane reduce;
    # the result is a lane-dense [1, bb] row.  b3 is an SMEM scalar.
    o_ref[...] = jnp.sum(h * w3_ref[...], axis=0, keepdims=True) + b3_ref[0, 0]


def _predict_kernel(x_ref, w1p_ref, b1p_ref, w2bd_ref, b2p_ref, w3b_ref,
                    o_ref):
    # All n_actions hidden states packed along the sublane axis: [A*H, bb].
    h = jnp.tanh(
        jnp.dot(w1p_ref[...], x_ref[...], preferred_element_type=jnp.float32)
        + b1p_ref[...])
    # One block-diagonal matmul replaces A small [H,H] matmuls (128x128 for
    # A=4, H=32 -- the MXU's native tile on v5e).
    h = jnp.tanh(
        jnp.dot(w2bd_ref[...], h, preferred_element_type=jnp.float32)
        + b2p_ref[...])
    s = jnp.dot(w3b_ref[...], h, preferred_element_type=jnp.float32)  # [A, bb]
    # Fused softmax over actions (sublane axis); exact division for accuracy.
    m = jnp.max(s, axis=0, keepdims=True)
    e = jnp.exp(s - m)
    o_ref[...] = e / jnp.sum(e, axis=0, keepdims=True)


# --------------------------------------------------------------------------- #
# Tiling helpers
# --------------------------------------------------------------------------- #
def _round_up(a, m):
    return ((a + m - 1) // m) * m


def _batch_tiling(batch, *, max_tile=2048, min_split=512):
    """Return (tile, padded_batch, num_tiles).

    Batches above `min_split` are split into >=2 lane-aligned tiles (feeds
    both v7x TensorCores through the "parallel" grid axis); tiles are
    multiples of 128 so every block's lane dim is unmasked.  Arbitrary batch
    sizes are handled by zero-padding (no huge-fallback-tile VMEM hazard).
    """
    if batch <= min_split:
        return batch, batch, 1
    tile = min(max_tile, _round_up(pl.cdiv(batch, 2), 128))
    padded = _round_up(batch, tile)
    return tile, padded, padded // tile


def _pad_lanes(arr, padded):
    """Zero-pad the last (lane/batch) axis of a [features, batch] array."""
    b = arr.shape[-1]
    if b == padded:
        return arr
    return jnp.pad(arr, ((0, 0), (0, padded - b)))


# --------------------------------------------------------------------------- #
# Wrappers
# --------------------------------------------------------------------------- #
def nn_forward(actions, x, params, *, max_batch_tile=2048):
    """Pallas NN.forward. actions: [B, n_actions], x: [B, input_size] -> [B, 1]."""
    w1x, w1a, b1, w2, b2, w3, b3 = params
    x = x.astype(jnp.float32)
    actions = actions.astype(jnp.float32)
    batch, input_size = x.shape
    hidden, n_actions = w1a.shape
    d_in = input_size + n_actions

    tile, padded, steps = _batch_tiling(batch, max_tile=max_batch_tile)

    # Fuse torch.cat((x, actions)): feed [x; a]^T and [W1x | W1a].
    xa = _pad_lanes(jnp.concatenate([x.T, actions.T], axis=0), padded)
    w1 = jnp.concatenate([w1x, w1a], axis=1)                     # [H, d_in]

    const = lambda shape: pl.BlockSpec(shape, lambda i: (0, 0))  # VMEM-resident

    out = pl.pallas_call(
        _forward_kernel,
        out_shape=jax.ShapeDtypeStruct((1, padded), jnp.float32),
        grid_spec=pltpu.PrefetchScalarGridSpec(
            num_scalar_prefetch=0,
            grid=(steps,),
            in_specs=[
                pl.BlockSpec((d_in, tile), lambda i: (0, i)),    # [x; a]^T
                const((hidden, d_in)),                           # W1
                const((hidden, 1)),                              # b1 (column)
                const((hidden, hidden)),                         # W2
                const((hidden, 1)),                              # b2
                const((hidden, 1)),                              # w3 (column)
                pl.BlockSpec((1, 1), lambda i: (0, 0),
                             memory_space=pltpu.MemorySpace.SMEM),  # b3 scalar
            ],
            out_specs=pl.BlockSpec((1, tile), lambda i: (0, i)),    # lane-dense
        ),
        compiler_params=pltpu.CompilerParams(
            dimension_semantics=("parallel",)),
    )(xa, w1, b1, w2, b2, w3, b3)
    return out[:, :batch].reshape(batch, 1)


def nn_predict(x, params, *, max_batch_tile=2048):
    """Pallas NN.predict: one fused kernel scores all actions + softmax."""
    w1x, w1a, b1, w2, b2, w3, _b3 = params   # b3 dropped (softmax shift-invariant)
    x = x.astype(jnp.float32)
    batch, input_size = x.shape
    hidden, n_actions = w1a.shape
    ah = n_actions * hidden

    tile, padded, steps = _batch_tiling(batch, max_tile=max_batch_tile)
    xt = _pad_lanes(x.T, padded)

    # Pack per-action weights into one block-structured set (tiny, built once
    # per call outside the kernel).
    eye = jnp.eye(n_actions, dtype=jnp.float32)
    w1p = jnp.tile(w1x, (n_actions, 1))                              # [A*H, in]
    b1p = jnp.tile(b1, (n_actions, 1)) + w1a.T.reshape(ah, 1)        # [A*H, 1]
    w2bd = jnp.kron(eye, w2)                                         # [A*H, A*H]
    b2p = jnp.tile(b2, (n_actions, 1))                               # [A*H, 1]
    w3b = jnp.kron(eye, w3.reshape(1, hidden))                       # [A, A*H]

    const = lambda shape: pl.BlockSpec(shape, lambda i: (0, 0))

    out = pl.pallas_call(
        _predict_kernel,
        out_shape=jax.ShapeDtypeStruct((n_actions, padded), jnp.float32),
        grid_spec=pltpu.PrefetchScalarGridSpec(
            num_scalar_prefetch=0,
            grid=(steps,),
            in_specs=[
                pl.BlockSpec((input_size, tile), lambda i: (0, i)),  # x^T
                const((ah, input_size)),                             # W1 packed
                const((ah, 1)),                                      # b1 packed
                const((ah, ah)),                                     # W2 blockdiag
                const((ah, 1)),                                      # b2 packed
                const((n_actions, ah)),                              # w3 packed
            ],
            out_specs=pl.BlockSpec((n_actions, tile), lambda i: (0, i)),
        ),
        compiler_params=pltpu.CompilerParams(
            dimension_semantics=("parallel",)),
    )(xt, w1p, b1p, w2bd, b2p, w3b)
    return out[:, :batch].T


def init_params(key, n_actions, input_size, hidden_size):
    """PyTorch-Linear-style init; weights kept in [out, in] orientation (what the
    transposed [features, batch] kernels consume directly), biases as columns.
    fc_input.weight is split into its x-part and action-part (cat order (x, a))."""
    d_in = n_actions + input_size
    k = jax.random.split(key, 7)

    def uniform(kk, shape, fan_in):
        bound = 1.0 / jnp.sqrt(fan_in)
        return jax.random.uniform(kk, shape, jnp.float32, -bound, bound)

    w1x = uniform(k[0], (hidden_size, input_size), d_in)   # fc_input, x columns
    w1a = uniform(k[1], (hidden_size, n_actions), d_in)    # fc_input, action cols
    b1 = uniform(k[2], (hidden_size, 1), d_in)
    w2 = uniform(k[3], (hidden_size, hidden_size), hidden_size)
    b2 = uniform(k[4], (hidden_size, 1), hidden_size)
    w3 = uniform(k[5], (hidden_size, 1), hidden_size)      # fc_output as column
    b3 = uniform(k[6], (1, 1), hidden_size)
    return (w1x, w1a, b1, w2, b2, w3, b3)


# --------------------------------------------------------------------------- #
# Self-test
# --------------------------------------------------------------------------- #
if __name__ == "__main__":
    n_actions, input_size, hidden_size = 4, 12, 32
    batch = 8

    key = jax.random.PRNGKey(0)
    kp, kx, ka, kx2 = jax.random.split(key, 4)
    params = init_params(kp, n_actions, input_size, hidden_size)
    w1x, w1a, b1, w2, b2, w3, b3 = params
    w1_full = jnp.concatenate([w1x, w1a], axis=1)   # cat order: (x, actions)

    x = jax.random.normal(kx, (batch, input_size), jnp.float32)
    idx = jax.random.randint(ka, (batch,), 0, n_actions)
    actions = jax.nn.one_hot(idx, n_actions, dtype=jnp.float32)

    def ref_forward(a, xx):
        cat = jnp.concatenate([xx, a], axis=-1)
        h = jnp.tanh(cat @ w1_full.T + b1[:, 0])
        h = jnp.tanh(h @ w2.T + b2[:, 0])
        return h @ w3 + b3[0, 0]

    # forward through the fused Pallas kernel (single-tile path)
    out = jax.block_until_ready(nn_forward(actions, x, params))
    assert out.shape == (batch, 1)
    assert jnp.allclose(out, ref_forward(actions, x), atol=1e-4, rtol=1e-4)

    # fused predict: block-packed scoring of all actions + in-kernel softmax
    probs = jax.block_until_ready(nn_predict(x, params))
    ref_cols = []
    for i in range(n_actions):
        a_i = jnp.zeros((batch, n_actions), jnp.float32).at[:, i].set(1.0)
        ref_cols.append(ref_forward(a_i, x)[:, 0])
    ref_probs = jax.nn.softmax(jnp.stack(ref_cols, axis=-1), axis=-1)
    assert probs.shape == (batch, n_actions)
    assert jnp.allclose(probs, ref_probs, atol=1e-4, rtol=1e-4)
    assert jnp.allclose(probs.sum(-1), 1.0, atol=1e-5)

    # exercise the tiled "parallel" path + batch padding (1000 -> 2 x 512 tiles)
    big_b = 1000
    xb = jax.random.normal(kx2, (big_b, input_size), jnp.float32)
    ab = jax.nn.one_hot(jax.random.randint(ka, (big_b,), 0, n_actions),
                        n_actions, dtype=jnp.float32)
    out_b = jax.block_until_ready(nn_forward(ab, xb, params))
    assert out_b.shape == (big_b, 1)
    assert jnp.allclose(out_b, ref_forward(ab, xb), atol=1e-4, rtol=1e-4)

    probs_b = jax.block_until_ready(nn_predict(xb, params))
    assert probs_b.shape == (big_b, n_actions)
    assert jnp.allclose(probs_b.sum(-1), 1.0, atol=1e-5)

    print("KERNEL_OK")
</pallas_src>

<mosaic_0001>
module attributes {stable_mosaic.version = 11 : i64} {
  func.func @_forward_kernel(%arg0: i32, %arg1: memref<16x8xf32, #tpu.memory_space<vmem>>, %arg2: memref<32x16xf32, #tpu.memory_space<vmem>>, %arg3: memref<32x1xf32, #tpu.memory_space<vmem>>, %arg4: memref<32x32xf32, #tpu.memory_space<vmem>>, %arg5: memref<32x1xf32, #tpu.memory_space<vmem>>, %arg6: memref<32x1xf32, #tpu.memory_space<vmem>>, %arg7: memref<1x1xf32, #tpu.memory_space<smem>>, %arg8: memref<1x8xf32, #tpu.memory_space<vmem>>) attributes {dimension_semantics = [#tpu.dimension_semantics<parallel>], iteration_bounds = array<i64: 1>, scalar_prefetch = 0 : i64, scratch_operands = 0 : i64, tpu.core_type = #tpu.core_type<tc>, window_params = [{transform_indices = @transform_0, window_bounds = array<i64: 16, 8>}, {pipeline_mode = #tpu.pipeline_mode<synchronous>, transform_indices = @transform_1, window_bounds = array<i64: 32, 16>}, {pipeline_mode = #tpu.pipeline_mode<synchronous>, transform_indices = @transform_2, window_bounds = array<i64: 32, 1>}, {pipeline_mode = #tpu.pipeline_mode<synchronous>, transform_indices = @transform_3, window_bounds = array<i64: 32, 32>}, {pipeline_mode = #tpu.pipeline_mode<synchronous>, transform_indices = @transform_4, window_bounds = array<i64: 32, 1>}, {pipeline_mode = #tpu.pipeline_mode<synchronous>, transform_indices = @transform_5, window_bounds = array<i64: 32, 1>}, {transform_indices = @transform_6, window_bounds = array<i64: 1, 1>}, {transform_indices = @transform_7, window_bounds = array<i64: 1, 8>}]} {
    %c0 = arith.constant 0 : index
    %c0_0 = arith.constant 0 : index
    %0 = vector.load %arg2[%c0, %c0_0] : memref<32x16xf32, #tpu.memory_space<vmem>>, vector<32x16xf32>
    %c0_1 = arith.constant 0 : index
    %c0_2 = arith.constant 0 : index
    %1 = vector.load %arg1[%c0_1, %c0_2] : memref<16x8xf32, #tpu.memory_space<vmem>>, vector<16x8xf32>
    %cst = arith.constant dense<0.000000e+00> : vector<32x8xf32>
    %2 = tpu.matmul %0, %1, %cst {dimension_numbers = #tpu.dot_dimension_numbers<[1], [0], [0], [1], [0, 0, 1, 1], [], []>} : vector<32x16xf32>, vector<16x8xf32>, vector<32x8xf32> -> vector<32x8xf32>
    %c0_3 = arith.constant 0 : index
    %c0_4 = arith.constant 0 : index
    %3 = vector.load %arg3[%c0_3, %c0_4] : memref<32x1xf32, #tpu.memory_space<vmem>>, vector<32x1xf32>
    %4 = vector.broadcast %3 : vector<32x1xf32> to vector<32x8xf32>
    %5 = arith.addf %2, %4 : vector<32x8xf32>
    %6 = math.tanh %5 : vector<32x8xf32>
    %c0_5 = arith.constant 0 : index
    %c0_6 = arith.constant 0 : index
    %7 = vector.load %arg4[%c0_5, %c0_6] : memref<32x32xf32, #tpu.memory_space<vmem>>, vector<32x32xf32>
    %cst_7 = arith.constant dense<0.000000e+00> : vector<32x8xf32>
    %8 = tpu.matmul %7, %6, %cst_7 {dimension_numbers = #tpu.dot_dimension_numbers<[1], [0], [0], [1], [0, 0, 1, 1], [], []>} : vector<32x32xf32>, vector<32x8xf32>, vector<32x8xf32> -> vector<32x8xf32>
    %c0_8 = arith.constant 0 : index
    %c0_9 = arith.constant 0 : index
    %9 = vector.load %arg5[%c0_8, %c0_9] : memref<32x1xf32, #tpu.memory_space<vmem>>, vector<32x1xf32>
    %10 = vector.broadcast %9 : vector<32x1xf32> to vector<32x8xf32>
    %11 = arith.addf %8, %10 : vector<32x8xf32>
    %12 = math.tanh %11 : vector<32x8xf32>
    %c0_10 = arith.constant 0 : index
    %c0_11 = arith.constant 0 : index
    %13 = vector.load %arg6[%c0_10, %c0_11] : memref<32x1xf32, #tpu.memory_space<vmem>>, vector<32x1xf32>
    %14 = vector.broadcast %13 : vector<32x1xf32> to vector<32x8xf32>
    %15 = arith.mulf %12, %14 : vector<32x8xf32>
    %cst_12 = arith.constant dense<0.000000e+00> : vector<8xf32>
    %16 = vector.multi_reduction <add>, %15, %cst_12 [0] : vector<32x8xf32> to vector<8xf32>
    %17 = vector.shape_cast %16 : vector<8xf32> to vector<1x8xf32>
    %c0_13 = arith.constant 0 : index
    %c0_14 = arith.constant 0 : index
    %18 = memref.load %arg7[%c0_13, %c0_14] : memref<1x1xf32, #tpu.memory_space<smem>>
    %19 = vector.broadcast %18 : f32 to vector<1x8xf32>
    %20 = arith.addf %17, %19 : vector<1x8xf32>
    %c0_15 = arith.constant 0 : index
    %c0_16 = arith.constant 0 : index
    %21 = vector.load %arg8[%c0_15, %c0_16] : memref<1x8xf32, #tpu.memory_space<vmem>>, vector<1x8xf32>
    tpu.vector_store %arg8[%c0_15, %c0_16], %20 {strides = array<i32>} : memref<1x8xf32, #tpu.memory_space<vmem>>, vector<1x8xf32>,
    return
  }
  func.func @transform_0(%arg0: i32) -> (i32, i32) {
    %c0_i32 = arith.constant 0 : i32
    %c0_i32_0 = arith.constant 0 : i32
    return %c0_i32, %arg0 : i32, i32
  }
  func.func @transform_1(%arg0: i32) -> (i32, i32) {
    %c0_i32 = arith.constant 0 : i32
    %c0_i32_0 = arith.constant 0 : i32
    %c0_i32_1 = arith.constant 0 : i32
    return %c0_i32, %c0_i32_0 : i32, i32
  }
  func.func @transform_2(%arg0: i32) -> (i32, i32) {
    %c0_i32 = arith.constant 0 : i32
    %c0_i32_0 = arith.constant 0 : i32
    %c0_i32_1 = arith.constant 0 : i32
    return %c0_i32, %c0_i32_0 : i32, i32
  }
  func.func @transform_3(%arg0: i32) -> (i32, i32) {
    %c0_i32 = arith.constant 0 : i32
    %c0_i32_0 = arith.constant 0 : i32
    %c0_i32_1 = arith.constant 0 : i32
    return %c0_i32, %c0_i32_0 : i32, i32
  }
  func.func @transform_4(%arg0: i32) -> (i32, i32) {
    %c0_i32 = arith.constant 0 : i32
    %c0_i32_0 = arith.constant 0 : i32
    %c0_i32_1 = arith.constant 0 : i32
    return %c0_i32, %c0_i32_0 : i32, i32
  }
  func.func @transform_5(%arg0: i32) -> (i32, i32) {
    %c0_i32 = arith.constant 0 : i32
    %c0_i32_0 = arith.constant 0 : i32
    %c0_i32_1 = arith.constant 0 : i32
    return %c0_i32, %c0_i32_0 : i32, i32
  }
  func.func @transform_6(%arg0: i32) -> (i32, i32) {
    %c0_i32 = arith.constant 0 : i32
    %c0_i32_0 = arith.constant 0 : i32
    %c0_i32_1 = arith.constant 0 : i32
    return %c0_i32, %c0_i32_0 : i32, i32
  }
  func.func @transform_7(%arg0: i32) -> (i32, i32) {
    %c0_i32 = arith.constant 0 : i32
    %c0_i32_0 = arith.constant 0 : i32
    return %c0_i32, %arg0 : i32, i32
  }
}

</mosaic_0001>

<llo_original>
// kernel: tpu_custom_call.1
$region0: #{tpu_custom_call.1}
  #allocation0 [shape = 'u32[]', space=smem, size = 0x4, offset = 0x4, fixed_abs, tag = 'smem constant byte address 0x4 - core index']
  #allocation1 [shape = 'u32[144,128]{1,0:T(1,128)}', space=vmem, size = 0x12000, scoped, tag = 'internal scratch']
  #allocation2 [shape = 'f32[1,1]{1,0:T(1,128)S(6)}', space=smem, size = 0x200, scoped, tag = 'scoped memory for tpu_custom_call.1']
  %s0 = inlined_call_operand.vmem [shape: f32[16,8], index: 0, kind: input, shape index: {}]
  %s1 = inlined_call_operand.vmem [shape: f32[32,16], index: 1, kind: input, shape index: {}]
  %s2 = inlined_call_operand.vmem [shape: f32[32,1], index: 2, kind: input, shape index: {}]
  %s3 = inlined_call_operand.vmem [shape: f32[32,32], index: 3, kind: input, shape index: {}]
  %s4 = inlined_call_operand.vmem [shape: f32[32,1], index: 4, kind: input, shape index: {}]
  %s5 = inlined_call_operand.vmem [shape: f32[32,1], index: 5, kind: input, shape index: {}]
  %s6 = inlined_call_operand.<no memory space> [shape: f32[1,1], index: 6, kind: input, shape index: {}]
  %s7 = inlined_call_operand.hbm [shape: f32[1,8], index: 7, kind: output, shape index: {}]
  %s8 = sld [smem:[#allocation0]]
  $region38: #{tpu_custom_call.1} parent=0
    _
  %s10 = ssub.s32 1, %s8
  %s11 = scalar_select 0, %s10, %s8
  %12 = sst [smem:[#allocation2]] %s6
  $region1: #{tpu_custom_call.1} parent=0
    #allocation3 [shape = 'u8[512]{0}', space=vmem, size = 0x400, scoped, tag = 'output window, operand 0, single buffered']
    #allocation4 [shape = 's32[1]{0}', space=sflag, size = 0x4, scoped, tag = 'scoped memory for tpu_custom_call.1']
    %13 = vsyncpa [#allocation4], 0
    // Predicated region
    $region2: #{tpu_custom_call.1} parent=1 // pred_check
      _
    $region3: #{tpu_custom_call.1} parent=1 // pred_check_branch
      %15 = sbr.rel (0) target = $region5
    $region4: #{tpu_custom_call.1} parent=1 // pred_region
      _
    $region5: #{tpu_custom_call.1} parent=1 // pred_fallthru
      _
    // Predicated region
    $region6: #{tpu_custom_call.1} parent=1 // pred_check
      _
    $region7: #{tpu_custom_call.1} parent=1 // pred_check_branch
      %17 = sbr.rel (0) target = $region9
    $region8: #{tpu_custom_call.1} parent=1 // pred_region
      _
    $region9: #{tpu_custom_call.1} parent=1 // pred_fallthru
      _
    // Predicated region
    $region10: #{tpu_custom_call.1} parent=1 // pred_check
      _
    $region11: #{tpu_custom_call.1} parent=1 // pred_check_branch
      %19 = sbr.rel (0) target = $region13
    $region12: #{tpu_custom_call.1} parent=1 // pred_region
      _
    $region13: #{tpu_custom_call.1} parent=1 // pred_fallthru
      _
    // Predicated region
    $region14: #{tpu_custom_call.1} parent=1 // pred_check
      _
    $region15: #{tpu_custom_call.1} parent=1 // pred_check_branch
      %21 = sbr.rel (0) target = $region17
    $region16: #{tpu_custom_call.1} parent=1 // pred_region
      _
    $region17: #{tpu_custom_call.1} parent=1 // pred_fallthru
      _
    // Predicated region
    $region18: #{tpu_custom_call.1} parent=1 // pred_check
      _
    $region19: #{tpu_custom_call.1} parent=1 // pred_check_branch
      %23 = sbr.rel (0) target = $region21
    $region20: #{tpu_custom_call.1} parent=1 // pred_region
      _
    $region21: #{tpu_custom_call.1} parent=1 // pred_fallthru
      _
    // Predicated region
    $region22: #{tpu_custom_call.1} parent=1 // pred_check
      _
    $region23: #{tpu_custom_call.1} parent=1 // pred_check_branch
      %25 = sbr.rel (0) target = $region25
    $region24: #{tpu_custom_call.1} parent=1 // pred_region
      _
    $region25: #{tpu_custom_call.1} parent=1 // pred_fallthru
      _
    // Predicated region
    $region26: #{tpu_custom_call.1} parent=1 // pred_check
      _
    $region27: #{tpu_custom_call.1} parent=1 // pred_check_branch
      %27 = sbr.rel (0) target = $region29
    $region28: #{tpu_custom_call.1} parent=1 // pred_region
      _
    $region29: #{tpu_custom_call.1} parent=1 // pred_fallthru
      _
    %v28 = vld [vmem:[%s1] sm:$0xff]
    %v29 = vld [vmem:[%s1 + $0x8] sm:$0xff]
    %v30 = vld [vmem:[%s1 + $0x10] sm:$0xff]
    %v31 = vld [vmem:[%s1 + $0x18] sm:$0xff]
    %v32 = vld [vmem:[%s0] sm:$0xff]
    %v33 = vld [vmem:[%s0 + $0x8] sm:$0xff]
    %v34 = vld [vmem:[%s2] sm:$0xff]
    %v35 = vld [vmem:[%s2 + $0x8] sm:$0xff]
    %v36 = vld [vmem:[%s2 + $0x10] sm:$0xff]
    %v37 = vld [vmem:[%s2 + $0x18] sm:$0xff]
    %39 = vset.pattern.permute.xlu0 0
    %40 = vperm.xlu0 %39, %v34
    %v41 = vpop.permute.xlu0 %40
    %44 = vset.pattern.permute.xlu0 0
    %45 = vperm.xlu0 %44, %v35
    %v46 = vpop.permute.xlu0 %45
    %49 = vset.pattern.permute.xlu0 0
    %50 = vperm.xlu0 %49, %v36
    %v51 = vpop.permute.xlu0 %50
    %54 = vset.pattern.permute.xlu0 0
    %55 = vperm.xlu0 %54, %v37
    %v56 = vpop.permute.xlu0 %55
    %vm58 = vcmask 130048
    %v60 = vsel %vm58, %v28, 0
    %v63 = vsel %vm58, %v29, 0
    %v66 = vsel %vm58, %v30, 0
    %v69 = vsel %vm58, %v31, 0
    %71 = vmatprep.subr.mxu0 0.0
    %72 = vmatpush1.msra.mxu0 %v32
    %73 = vmatprep.subr.mxu0 0.0
    %74 = vmatpush1.msra.mxu0 %v33
    %75 = vmatprep.subr.mxu0 0.0
    %76 = vmatpush1.msra.mxu0 0.0
    %77 = vmatprep.subr.mxu0 0.0
    %78 = vmatpush1.msra.mxu0 0.0
    %79 = vmatprep.subr.mxu0 0.0
    %80 = vmatpush1.msra.mxu0 0.0
    %81 = vmatprep.subr.mxu0 0.0
    %82 = vmatpush1.msra.mxu0 0.0
    %83 = vmatprep.subr.mxu0 0.0
    %84 = vmatpush1.msra.mxu0 0.0
    %85 = vmatprep.subr.mxu0 0.0
    %86 = vmatpush1.msra.mxu0 0.0
    %87 = vmatprep.subr.mxu0 0.0
    %88 = vmatpush1.msra.mxu0 0.0
    %89 = vmatprep.subr.mxu0 0.0
    %90 = vmatpush1.msra.mxu0 0.0
    %91 = vmatprep.subr.mxu0 0.0
    %92 = vmatpush1.msra.mxu0 0.0
    %93 = vmatprep.subr.mxu0 0.0
    %94 = vmatpush1.msra.mxu0 0.0
    %95 = vmatprep.subr.mxu0 0.0
    %96 = vmatpush1.msra.mxu0 0.0
    %97 = vmatprep.subr.mxu0 0.0
    %98 = vmatpush1.msra.mxu0 0.0
    %99 = vmatprep.subr.mxu0 0.0
    %100 = vmatpush1.msra.mxu0 0.0
    %101 = vmatprep.subr.mxu0 0.0
    %102 = vmatpush1.msra.mxu0 0.0
    %103 = vmatprep.subr.mxu0 0.0
    %104 = vmatpush1.msra.mxu0 0.0
    %105 = vmatprep.subr.mxu0 0.0
    %106 = vmatpush1.msra.mxu0 0.0
    %107 = vmatprep.subr.mxu0 0.0
    %108 = vmatpush1.msra.mxu0 0.0
    %109 = vmatprep.subr.mxu0 0.0
    %110 = vmatpush1.msra.mxu0 0.0
    %111 = vmatprep.subr.mxu0 0.0
    %112 = vmatpush1.msra.mxu0 0.0
    %113 = vmatprep.subr.mxu0 0.0
    %114 = vmatpush1.msra.mxu0 0.0
    %115 = vmatprep.subr.mxu0 0.0
    %116 = vmatpush1.msra.mxu0 0.0
    %117 = vmatprep.subr.mxu0 0.0
    %118 = vmatpush1.msra.mxu0 0.0
    %119 = vmatprep.subr.mxu0 0.0
    %120 = vmatpush1.msra.mxu0 0.0
    %121 = vmatprep.subr.mxu0 0.0
    %122 = vmatpush1.msra.mxu0 0.0
    %123 = vmatprep.subr.mxu0 0.0
    %124 = vmatpush1.msra.mxu0 0.0
    %125 = vmatprep.subr.mxu0 0.0
    %126 = vmatpush1.msra.mxu0 0.0
    %127 = vmatprep.subr.mxu0 0.0
    %128 = vmatpush1.msra.mxu0 0.0
    %129 = vmatprep.subr.mxu0 0.0
    %130 = vmatpush1.msra.mxu0 0.0
    %131 = vmatprep.subr.mxu0 0.0
    %132 = vmatpush1.msra.mxu0 0.0
    %133 = vmatprep.subr.mxu0 0.0
    %134 = vmatpush1.msra.mxu0 0.0
    %135 = vmatprep.mubr.f32.mxu0 0.0
    %136 = vmatmul.mubr.f32.gmra.mrb[0].mxu0 %v60
    %v137 = vpop.f32.mrb[0].mxu0
    %v138 = vadd.f32 %v41, %v137
    %v139 = vpop.f32.mrb[0].mxu0
    %140 = vmatprep.mubr.f32.mxu0 0.0
    %141 = vmatmul.mubr.f32.gmra.mrb[0].mxu0 %v63
    %v142 = vpop.f32.mrb[0].mxu0
    %v143 = vadd.f32 %v46, %v142
    %v144 = vpop.f32.mrb[0].mxu0
    %145 = vmatprep.mubr.f32.mxu0 0.0
    %146 = vmatmul.mubr.f32.gmra.mrb[0].mxu0 %v66
    %v147 = vpop.f32.mrb[0].mxu0
    %v148 = vadd.f32 %v51, %v147
    %v149 = vpop.f32.mrb[0].mxu0
    %150 = vmatprep.mubr.f32.mxu0 0.0
    %151 = vmatmul.mubr.f32.gmra.mrb[0].mxu0 %v69
    %v152 = vpop.f32.mrb[0].mxu0
    %v153 = vadd.f32 %v56, %v152
    %v154 = vpop.f32.mrb[0].mxu0
    %155 = vdwg.mxu0
    %v156 = vtanh.pop %v138
    %v157 = vtanh.pop %v143
    %v158 = vtanh.pop %v148
    %v159 = vtanh.pop %v153
    %v160 = vld [vmem:[%s3] sm:$0xff]
    %v161 = vld [vmem:[%s3 + $0x8] sm:$0xff]
    %v162 = vld [vmem:[%s3 + $0x10] sm:$0xff]
    %v163 = vld [vmem:[%s3 + $0x18] sm:$0xff]
    %v164 = vld [vmem:[%s4] sm:$0xff]
    %v165 = vld [vmem:[%s4 + $0x8] sm:$0xff]
    %v166 = vld [vmem:[%s4 + $0x10] sm:$0xff]
    %v167 = vld [vmem:[%s4 + $0x18] sm:$0xff]
    %169 = vset.pattern.permute.xlu0 0
    %170 = vperm.xlu0 %169, %v164
    %v171 = vpop.permute.xlu0 %170
    %174 = vset.pattern.permute.xlu0 0
    %175 = vperm.xlu0 %174, %v165
    %v176 = vpop.permute.xlu0 %175
    %179 = vset.pattern.permute.xlu0 0
    %180 = vperm.xlu0 %179, %v166
    %v181 = vpop.permute.xlu0 %180
    %184 = vset.pattern.permute.xlu0 0
    %185 = vperm.xlu0 %184, %v167
    %v186 = vpop.permute.xlu0 %185
    %vm188 = vcmask 261120
    %v190 = vsel %vm188, %v160, 0
    %v193 = vsel %vm188, %v161, 0
    %v196 = vsel %vm188, %v162, 0
    %v199 = vsel %vm188, %v163, 0
    %201 = vmatprep.subr.mxu0 0.0
    %202 = vmatpush1.msra.mxu0 %v156
    %203 = vmatprep.subr.mxu0 0.0
    %204 = vmatpush1.msra.mxu0 %v157
    %205 = vmatprep.subr.mxu0 0.0
    %206 = vmatpush1.msra.mxu0 %v158
    %207 = vmatprep.subr.mxu0 0.0
    %208 = vmatpush1.msra.mxu0 %v159
    %209 = vmatprep.subr.mxu0 0.0
    %210 = vmatpush1.msra.mxu0 0.0
    %211 = vmatprep.subr.mxu0 0.0
    %212 = vmatpush1.msra.mxu0 0.0
    %213 = vmatprep.subr.mxu0 0.0
    %214 = vmatpush1.msra.mxu0 0.0
    %215 = vmatprep.subr.mxu0 0.0
    %216 = vmatpush1.msra.mxu0 0.0
    %217 = vmatprep.subr.mxu0 0.0
    %218 = vmatpush1.msra.mxu0 0.0
    %219 = vmatprep.subr.mxu0 0.0
    %220 = vmatpush1.msra.mxu0 0.0
    %221 = vmatprep.subr.mxu0 0.0
    %222 = vmatpush1.msra.mxu0 0.0
    %223 = vmatprep.subr.mxu0 0.0
    %224 = vmatpush1.msra.mxu0 0.0
    %225 = vmatprep.subr.mxu0 0.0
    %226 = vmatpush1.msra.mxu0 0.0
    %227 = vmatprep.subr.mxu0 0.0
    %228 = vmatpush1.msra.mxu0 0.0
    %229 = vmatprep.subr.mxu0 0.0
    %230 = vmatpush1.msra.mxu0 0.0
    %231 = vmatprep.subr.mxu0 0.0
    %232 = vmatpush1.msra.mxu0 0.0
    %233 = vmatprep.subr.mxu0 0.0
    %234 = vmatpush1.msra.mxu0 0.0
    %235 = vmatprep.subr.mxu0 0.0
    %236 = vmatpush1.msra.mxu0 0.0
    %237 = vmatprep.subr.mxu0 0.0
    %238 = vmatpush1.msra.mxu0 0.0
    %239 = vmatprep.subr.mxu0 0.0
    %240 = vmatpush1.msra.mxu0 0.0
    %241 = vmatprep.subr.mxu0 0.0
    %242 = vmatpush1.msra.mxu0 0.0
    %243 = vmatprep.subr.mxu0 0.0
    %244 = vmatpush1.msra.mxu0 0.0
    %245 = vmatprep.subr.mxu0 0.0
    %246 = vmatpush1.msra.mxu0 0.0
    %247 = vmatprep.subr.mxu0 0.0
    %248 = vmatpush1.msra.mxu0 0.0
    %249 = vmatprep.subr.mxu0 0.0
    %250 = vmatpush1.msra.mxu0 0.0
    %251 = vmatprep.subr.mxu0 0.0
    %252 = vmatpush1.msra.mxu0 0.0
    %253 = vmatprep.subr.mxu0 0.0
    %254 = vmatpush1.msra.mxu0 0.0
    %255 = vmatprep.subr.mxu0 0.0
    %256 = vmatpush1.msra.mxu0 0.0
    %257 = vmatprep.subr.mxu0 0.0
    %258 = vmatpush1.msra.mxu0 0.0
    %259 = vmatprep.subr.mxu0 0.0
    %260 = vmatpush1.msra.mxu0 0.0
    %261 = vmatprep.subr.mxu0 0.0
    %262 = vmatpush1.msra.mxu0 0.0
    %263 = vmatprep.subr.mxu0 0.0
    %264 = vmatpush1.msra.mxu0 0.0
    %265 = vmatprep.mubr.f32.mxu0 0.0
    %266 = vmatmul.mubr.f32.gmra.mrb[0].mxu0 %v190
    %v267 = vpop.f32.mrb[0].mxu0
    %v268 = vadd.f32 %v171, %v267
    %v269 = vpop.f32.mrb[0].mxu0
    %270 = vmatprep.mubr.f32.mxu0 0.0
    %271 = vmatmul.mubr.f32.gmra.mrb[0].mxu0 %v193
    %v272 = vpop.f32.mrb[0].mxu0
    %v273 = vadd.f32 %v176, %v272
    %v274 = vpop.f32.mrb[0].mxu0
    %275 = vmatprep.mubr.f32.mxu0 0.0
    %276 = vmatmul.mubr.f32.gmra.mrb[0].mxu0 %v196
    %v277 = vpop.f32.mrb[0].mxu0
    %v278 = vadd.f32 %v181, %v277
    %v279 = vpop.f32.mrb[0].mxu0
    %280 = vmatprep.mubr.f32.mxu0 0.0
    %281 = vmatmul.mubr.f32.gmra.mrb[0].mxu0 %v199
    %v282 = vpop.f32.mrb[0].mxu0
    %v283 = vadd.f32 %v186, %v282
    %v284 = vpop.f32.mrb[0].mxu0
    %285 = vdwg.mxu0
    %v286 = vtanh.pop %v268
    %v287 = vtanh.pop %v273
    %v288 = vtanh.pop %v278
    %v289 = vtanh.pop %v283
    %v290 = vld [vmem:[%s5] sm:$0xff]
    %v291 = vld [vmem:[%s5 + $0x8] sm:$0xff]
    %v292 = vld [vmem:[%s5 + $0x10] sm:$0xff]
    %v293 = vld [vmem:[%s5 + $0x18] sm:$0xff]
    %295 = vset.pattern.permute.xlu0 0
    %296 = vperm.xlu0 %295, %v290
    %v297 = vpop.permute.xlu0 %296
    %300 = vset.pattern.permute.xlu0 0
    %301 = vperm.xlu0 %300, %v291
    %v302 = vpop.permute.xlu0 %301
    %305 = vset.pattern.permute.xlu0 0
    %306 = vperm.xlu0 %305, %v292
    %v307 = vpop.permute.xlu0 %306
    %310 = vset.pattern.permute.xlu0 0
    %311 = vperm.xlu0 %310, %v293
    %v312 = vpop.permute.xlu0 %311
    %v314 = vmul.f32 %v286, %v297
    %v315 = vmul.f32 %v287, %v302
    %v316 = vmul.f32 %v288, %v307
    %v317 = vmul.f32 %v289, %v312
    %vm318 = vcmask 64512
    %v319 = vsel %vm318, %v314, 0.0
    %v320 = vsel %vm318, %v315, 0.0
    %v321 = vadd.f32 %v319, %v320
    %v322 = vsel %vm318, %v316, 0.0
    %v323 = vadd.f32 %v321, %v322
    %v324 = vsel %vm318, %v317, 0.0
    %v325 = vadd.f32 %v323, %v324
    %v326 = vrot.slane %v325, 4
    %v327 = vadd.f32 %v325, %v326
    %v328 = vrot.slane %v327, 2
    %v329 = vadd.f32 %v327, %v328
    %v330 = vrot.slane %v329, 1
    %v331 = vadd.f32 %v329, %v330
    %s332 = sld [smem:[#allocation2]]
    %v333 = vstv %s332
    %v334 = vadd.f32 %v331, %v333
    %vm335 = vcmask 57344
    %336 = vst.msk [vmem:[#allocation3] sm:$0x1] %vm335, %v334
    // Predicated region
    $region30: #{tpu_custom_call.1} parent=1 // pred_check
      _
    $region31: #{tpu_custom_call.1} parent=1 // pred_check_branch
      %338 = sbr.rel (0) target = $region33
    $region32: #{tpu_custom_call.1} parent=1 // pred_region
      %s340 = ssub.s32 16, 16
      %341 = vsyncadd [#allocation4], %s340
      %s343 = sshll.u32 [#allocation3], 4
      %s344 = int_to_ptr.vmem [resolvable:$true] %s343
      %346 = dma.vmem_to_hbm [thread:$0]  %s344, 16, %s7, [#allocation4]
    $region33: #{tpu_custom_call.1} parent=1 // pred_fallthru
      _
    // Predicated region
    $region34: #{tpu_custom_call.1} parent=1 // pred_check
      _
    $region35: #{tpu_custom_call.1} parent=1 // pred_check_branch
      %348 = sbr.rel (0) target = $region37
    $region36: #{tpu_custom_call.1} parent=1 // pred_region
      %349 = dma.done [#allocation4], 16
    $region37: #{tpu_custom_call.1} parent=1 // pred_fallthru
      _
    %350 = vsyncpa [#allocation4], 1

</llo_original>
